<compile_context>
chip_gen: v7x
topology: tpu7x:2x2x1
jax: 0.10.0
libtpu: 0.0.40
codegen_flags: <defaults>
</compile_context>

<pallas_src>
import functools

import jax
import jax.numpy as jnp
from jax.experimental import pallas as pl
from jax.experimental.pallas import tpu as pltpu


def _miou_kernel(x_ref, t_ref, inter_ref, union_ref, *,
                 n_classes, tile, hw, n_inner, need_mask):
    # x_ref:  (1, C, T)   logits chunk (native dtype; upcast here)
    # t_ref:  (1, 1, T)   int32 labels chunk
    # inter_ref, union_ref: (1, 1, C, 1) f32 resident accumulators
    ki = pl.program_id(2)

    @pl.when(ki == 0)
    def _init():
        inter_ref[...] = jnp.zeros_like(inter_ref)
        union_ref[...] = jnp.zeros_like(union_ref)

    x = x_ref[...].astype(jnp.float32)                      # (1, C, T)
    t = t_ref[...]                                          # (1, 1, T)

    if need_mask:
        # Lane validity for the final (padded) chunk and for any fully
        # out-of-range dummy chunk created by an uneven KO split.
        chunk = pl.program_id(1) * n_inner + ki
        lane = jax.lax.broadcasted_iota(jnp.int32, (1, 1, tile), 2)
        valid = (chunk * tile + lane) < hw                  # (1, 1, T) bool
        x = jnp.where(valid, x, 0.0)                        # scrub OOB garbage

    # Softmax over the class (sublane) axis: one approximate reciprocal per
    # pixel on the EUP, broadcast over C (no full (C, T) divide).
    m = jnp.max(x, axis=1, keepdims=True)                   # (1, 1, T)
    e = jnp.exp(x - m)                                      # (1, C, T)
    s = jnp.sum(e, axis=1, keepdims=True)                   # (1, 1, T)
    p = e * pl.reciprocal(s, approx=True)                   # (1, C, T)

    # One-hot fused into selects against a (1, C, 1) class iota — no separate
    # (C, T) one-hot tensor and no p * one_hot multiply.
    cls = jax.lax.broadcasted_iota(jnp.int32, (1, n_classes, 1), 1)
    if need_mask:
        hot = jnp.logical_and(cls == t, valid)              # (1, C, T) bool
        p_sum_src = jnp.where(valid, p, 0.0)
    else:
        hot = cls == t
        p_sum_src = p

    # Per-class spatial partial sums; keepdims keeps C on sublanes so the
    # accumulator update needs no sublane->lane relayout.  Union folded
    # algebraically: union = sum(p) + count - inter.
    inter_c = jnp.sum(jnp.where(hot, p, 0.0), axis=2, keepdims=True)   # (1, C, 1)
    p_c = jnp.sum(p_sum_src, axis=2, keepdims=True)                    # (1, C, 1)
    cnt_c = jnp.sum(hot.astype(jnp.float32), axis=2, keepdims=True)    # (1, C, 1)
    union_c = p_c + cnt_c - inter_c

    inter_ref[...] += inter_c.reshape(inter_ref.shape)
    union_ref[...] += union_c.reshape(union_ref.shape)


def _vmem_budget():
    """(per-(C,T) f32 slab byte budget, scoped-VMEM limit) per TPU generation."""
    vmem_cap = None
    try:
        vmem_cap = pltpu.get_tpu_info().vmem_capacity_bytes
    except Exception:
        pass
    if vmem_cap is not None and vmem_cap >= 100 * 1024 * 1024:
        # v5e / v6e: 128 MiB physical VMEM -> big tiles, generous scoped limit.
        return 6 * 1024 * 1024, 96 * 1024 * 1024
    # v7x (64 MiB VMEM per TensorCore) or unknown backend: stay conservative.
    return 3 * 1024 * 1024, 48 * 1024 * 1024


def _pick_spatial_tile(hw, n_classes, slab_bytes):
    """Lane tile T: a multiple of 128 with C*T*4 <= slab_bytes, or the full
    spatial extent when the whole image fits in one tile (always legal)."""
    cap = max(128, (slab_bytes // (4 * max(n_classes, 1))) // 128 * 128)
    return hw if hw <= cap else cap


def miou_loss(inputs, target, weights, *, tile=None):
    """inputs: (N, C, H, W) float logits; target: (N, H, W) integer labels;
    weights: (C,) per-class weights.  Returns the scalar loss.
    `tile` optionally forces the lane tile (multiple of 128, or == H*W)."""
    N, C, H, W = inputs.shape
    HW = H * W

    # Keep logits in their native dtype (bf16 streams half the HBM bytes);
    # the f32 upcast happens in-kernel.
    x = inputs.reshape(N, C, HW)
    t = target.reshape(N, 1, HW).astype(jnp.int32)

    slab_bytes, vmem_limit = _vmem_budget()
    T = tile if tile is not None else _pick_spatial_tile(HW, C, slab_bytes)
    num_chunks = pl.cdiv(HW, T)

    # Keep both TensorCores (v7x) busy when N is odd (incl. N == 1) by also
    # splitting the chunk axis; KO partials are summed back in JAX.
    ko = 2 if (N % 2 == 1 and num_chunks >= 2) else 1
    n_inner = pl.cdiv(num_chunks, ko)
    last_chunk = num_chunks - 1
    # Mask if the last chunk is padded past HW, or the KO split is uneven
    # (the uneven split adds a fully-masked dummy chunk via index clamping).
    need_mask = (num_chunks * T != HW) or (ko * n_inner != num_chunks)

    if ko * n_inner != num_chunks:
        def chunk_idx(o, i):
            # Clamp so the dummy chunk re-reads the last real block; its
            # contribution is zeroed by the in-kernel lane mask.
            return jnp.minimum(o * n_inner + i, last_chunk)
    else:
        def chunk_idx(o, i):
            return o * n_inner + i

    acc_shape = jax.ShapeDtypeStruct((N, ko, C, 1), jnp.float32)

    inter, union = pl.pallas_call(
        functools.partial(_miou_kernel, n_classes=C, tile=T, hw=HW,
                          n_inner=n_inner, need_mask=need_mask),
        out_shape=(acc_shape, acc_shape),
        grid=(N, ko, n_inner),
        in_specs=[
            pl.BlockSpec((1, C, T), lambda n, o, i: (n, 0, chunk_idx(o, i))),
            pl.BlockSpec((1, 1, T), lambda n, o, i: (n, 0, chunk_idx(o, i))),
        ],
        out_specs=(
            pl.BlockSpec((1, 1, C, 1), lambda n, o, i: (n, o, 0, 0)),
            pl.BlockSpec((1, 1, C, 1), lambda n, o, i: (n, o, 0, 0)),
        ),
        compiler_params=pltpu.CompilerParams(
            dimension_semantics=("parallel", "parallel", "arbitrary"),
            vmem_limit_bytes=vmem_limit,
        ),
    )(x, t)

    inter = inter[:, :, :, 0].sum(axis=1)                   # (N, C)
    union = union[:, :, :, 0].sum(axis=1)                   # (N, C)
    loss = weights[None, :].astype(jnp.float32) * inter / (union + 1e-8)
    return -jnp.mean(loss)


def _miou_loss_ref(inputs, target, weights):
    # pure-JAX reference (mirrors the PyTorch forward exactly)
    N, C, H, W = inputs.shape
    p = jax.nn.softmax(inputs.astype(jnp.float32), axis=1)
    one_hot = jax.nn.one_hot(target.astype(jnp.int32), C, axis=1,
                             dtype=jnp.float32)             # (N, C, H, W)
    inter = (p * one_hot).reshape(N, C, -1).sum(2)
    union = (p + one_hot - p * one_hot).reshape(N, C, -1).sum(2)
    loss = weights[None, :] * inter / (union + 1e-8)
    return -jnp.mean(loss)


if __name__ == "__main__":
    key = jax.random.PRNGKey(0)
    k1, k2, k3, k4 = jax.random.split(key, 4)

    # Tolerance note: the kernel uses pl.reciprocal(approx=True) for the
    # softmax denominator (EUP), so ~1e-4-level relative error vs. the exact
    # f32 reference is expected; accumulators stay f32.
    RTOL, ATOL = 2e-3, 2e-3

    # Case 1: aligned spatial extent (typical NCHW segmentation use).
    N, C, H, W = 2, 4, 16, 16
    x1 = jax.random.normal(k1, (N, C, H, W), dtype=jnp.float32)
    t1 = jax.random.randint(k2, (N, H, W), 0, C, dtype=jnp.int32)
    w1 = jnp.ones((C,), dtype=jnp.float32)
    out1 = jax.block_until_ready(miou_loss(x1, t1, w1))
    ref1 = _miou_loss_ref(x1, t1, w1)
    assert jnp.allclose(out1, ref1, rtol=RTOL, atol=ATOL), (out1, ref1)

    # Case 2: non-128-multiple spatial size with a forced small tile —
    # exercises the cdiv grid, last-chunk lane masking, and the odd-N KO
    # (megacore) split with index clamping.
    N, C, H, W = 1, 3, 10, 20
    x2 = jax.random.normal(k3, (N, C, H, W), dtype=jnp.float32)
    t2 = jax.random.randint(k4, (N, H, W), 0, C, dtype=jnp.int32)
    w2 = jnp.linspace(0.5, 1.5, C, dtype=jnp.float32)
    out2 = jax.block_until_ready(miou_loss(x2, t2, w2, tile=128))
    ref2 = _miou_loss_ref(x2, t2, w2)
    assert jnp.allclose(out2, ref2, rtol=RTOL, atol=ATOL), (out2, ref2)

    print("KERNEL_OK")
</pallas_src>

<mosaic_0001>
module attributes {stable_mosaic.version = 11 : i64} {
  func.func @_miou_kernel(%arg0: i32, %arg1: i32, %arg2: i32, %arg3: memref<1x4x256xf32, #tpu.memory_space<vmem>>, %arg4: memref<1x1x256xi32, #tpu.memory_space<vmem>>, %arg5: memref<1x1x4x1xf32, #tpu.memory_space<vmem>>, %arg6: memref<1x1x4x1xf32, #tpu.memory_space<vmem>>) attributes {dimension_semantics = [#tpu.dimension_semantics<parallel>, #tpu.dimension_semantics<parallel>, #tpu.dimension_semantics<arbitrary>], iteration_bounds = array<i64: 2, 1, 1>, scalar_prefetch = 0 : i64, scratch_operands = 0 : i64, tpu.core_type = #tpu.core_type<tc>, window_params = [{transform_indices = @transform_0, window_bounds = array<i64: 1, 4, 256>}, {transform_indices = @transform_1, window_bounds = array<i64: 1, 1, 256>}, {transform_indices = @transform_2, window_bounds = array<i64: 1, 1, 4, 1>}, {transform_indices = @transform_3, window_bounds = array<i64: 1, 1, 4, 1>}]} {
    %c0_i32 = arith.constant 0 : i32
    %0 = arith.cmpi eq, %arg2, %c0_i32 : i32
    %1 = arith.extui %0 : i1 to i32
    %c0_i32_0 = arith.constant 0 : i32
    %2 = arith.cmpi ne, %1, %c0_i32_0 : i32
    scf.if %2 {
      %cst_27 = arith.constant 0.000000e+00 : f32
      %39 = vector.broadcast %cst_27 : f32 to vector<1x1x4x1xf32>
      %c0_28 = arith.constant 0 : index
      %c0_29 = arith.constant 0 : index
      %c0_30 = arith.constant 0 : index
      %c0_31 = arith.constant 0 : index
      %40 = vector.load %arg5[%c0_28, %c0_29, %c0_30, %c0_31] : memref<1x1x4x1xf32, #tpu.memory_space<vmem>>, vector<1x1x4x1xf32>
      tpu.vector_store %arg5[%c0_28, %c0_29, %c0_30, %c0_31], %39 {strides = array<i32>} : memref<1x1x4x1xf32, #tpu.memory_space<vmem>>, vector<1x1x4x1xf32>,
      %cst_32 = arith.constant 0.000000e+00 : f32
      %41 = vector.broadcast %cst_32 : f32 to vector<1x1x4x1xf32>
      %c0_33 = arith.constant 0 : index
      %c0_34 = arith.constant 0 : index
      %c0_35 = arith.constant 0 : index
      %c0_36 = arith.constant 0 : index
      %42 = vector.load %arg6[%c0_33, %c0_34, %c0_35, %c0_36] : memref<1x1x4x1xf32, #tpu.memory_space<vmem>>, vector<1x1x4x1xf32>
      tpu.vector_store %arg6[%c0_33, %c0_34, %c0_35, %c0_36], %41 {strides = array<i32>} : memref<1x1x4x1xf32, #tpu.memory_space<vmem>>, vector<1x1x4x1xf32>,
    } else {
    }
    %c0 = arith.constant 0 : index
    %c0_1 = arith.constant 0 : index
    %c0_2 = arith.constant 0 : index
    %3 = vector.load %arg3[%c0, %c0_1, %c0_2] : memref<1x4x256xf32, #tpu.memory_space<vmem>>, vector<1x4x256xf32>
    %c0_3 = arith.constant 0 : index
    %c0_4 = arith.constant 0 : index
    %c0_5 = arith.constant 0 : index
    %4 = vector.load %arg4[%c0_3, %c0_4, %c0_5] : memref<1x1x256xi32, #tpu.memory_space<vmem>>, vector<1x1x256xi32>
    %cst = arith.constant dense<0xFF800000> : vector<1x256xf32>
    %5 = vector.multi_reduction <maximumf>, %3, %cst [1] : vector<1x4x256xf32> to vector<1x256xf32>
    %6 = vector.shape_cast %5 : vector<1x256xf32> to vector<1x1x256xf32>
    %7 = vector.broadcast %6 : vector<1x1x256xf32> to vector<1x4x256xf32>
    %8 = arith.subf %3, %7 : vector<1x4x256xf32>
    %9 = math.exp %8 : vector<1x4x256xf32>
    %cst_6 = arith.constant dense<0.000000e+00> : vector<1x256xf32>
    %10 = vector.multi_reduction <add>, %9, %cst_6 [1] : vector<1x4x256xf32> to vector<1x256xf32>
    %11 = vector.shape_cast %10 : vector<1x256xf32> to vector<1x1x256xf32>
    %12 = tpu.reciprocal %11 {approx = true} : vector<1x1x256xf32> -> vector<1x1x256xf32>
    %13 = vector.broadcast %12 : vector<1x1x256xf32> to vector<1x4x256xf32>
    %14 = arith.mulf %9, %13 : vector<1x4x256xf32>
    %15 = tpu.iota {dimensions = array<i32: 1>} : vector<1x4x1xi32>
    %16 = vector.broadcast %15 : vector<1x4x1xi32> to vector<1x4x256xi32>
    %17 = vector.broadcast %4 : vector<1x1x256xi32> to vector<1x4x256xi32>
    %18 = arith.cmpi eq, %16, %17 : vector<1x4x256xi32>
    %cst_7 = arith.constant 0.000000e+00 : f32
    %19 = vector.broadcast %cst_7 : f32 to vector<1x4x256xf32>
    %20 = arith.select %18, %14, %19 : vector<1x4x256xi1>, vector<1x4x256xf32>
    %cst_8 = arith.constant dense<0.000000e+00> : vector<1x4xf32>
    %21 = vector.multi_reduction <add>, %20, %cst_8 [2] : vector<1x4x256xf32> to vector<1x4xf32>
    %22 = vector.shape_cast %21 : vector<1x4xf32> to vector<1x4x1xf32>
    %cst_9 = arith.constant dense<0.000000e+00> : vector<1x4xf32>
    %23 = vector.multi_reduction <add>, %14, %cst_9 [2] : vector<1x4x256xf32> to vector<1x4xf32>
    %24 = vector.shape_cast %23 : vector<1x4xf32> to vector<1x4x1xf32>
    %25 = arith.extui %18 : vector<1x4x256xi1> to vector<1x4x256xi32>
    %26 = arith.sitofp %25 : vector<1x4x256xi32> to vector<1x4x256xf32>
    %cst_10 = arith.constant dense<0.000000e+00> : vector<1x4xf32>
    %27 = vector.multi_reduction <add>, %26, %cst_10 [2] : vector<1x4x256xf32> to vector<1x4xf32>
    %28 = vector.shape_cast %27 : vector<1x4xf32> to vector<1x4x1xf32>
    %29 = arith.addf %24, %28 : vector<1x4x1xf32>
    %30 = arith.subf %29, %22 : vector<1x4x1xf32>
    %c0_11 = arith.constant 0 : index
    %c0_12 = arith.constant 0 : index
    %c0_13 = arith.constant 0 : index
    %c0_14 = arith.constant 0 : index
    %31 = vector.load %arg5[%c0_11, %c0_12, %c0_13, %c0_14] : memref<1x1x4x1xf32, #tpu.memory_space<vmem>>, vector<1x1x4x1xf32>
    %32 = vector.shape_cast %22 : vector<1x4x1xf32> to vector<1x1x4x1xf32>
    %33 = arith.addf %31, %32 : vector<1x1x4x1xf32>
    %c0_15 = arith.constant 0 : index
    %c0_16 = arith.constant 0 : index
    %c0_17 = arith.constant 0 : index
    %c0_18 = arith.constant 0 : index
    %34 = vector.load %arg5[%c0_15, %c0_16, %c0_17, %c0_18] : memref<1x1x4x1xf32, #tpu.memory_space<vmem>>, vector<1x1x4x1xf32>
    tpu.vector_store %arg5[%c0_15, %c0_16, %c0_17, %c0_18], %33 {strides = array<i32>} : memref<1x1x4x1xf32, #tpu.memory_space<vmem>>, vector<1x1x4x1xf32>,
    %c0_19 = arith.constant 0 : index
    %c0_20 = arith.constant 0 : index
    %c0_21 = arith.constant 0 : index
    %c0_22 = arith.constant 0 : index
    %35 = vector.load %arg6[%c0_19, %c0_20, %c0_21, %c0_22] : memref<1x1x4x1xf32, #tpu.memory_space<vmem>>, vector<1x1x4x1xf32>
    %36 = vector.shape_cast %30 : vector<1x4x1xf32> to vector<1x1x4x1xf32>
    %37 = arith.addf %35, %36 : vector<1x1x4x1xf32>
    %c0_23 = arith.constant 0 : index
    %c0_24 = arith.constant 0 : index
    %c0_25 = arith.constant 0 : index
    %c0_26 = arith.constant 0 : index
    %38 = vector.load %arg6[%c0_23, %c0_24, %c0_25, %c0_26] : memref<1x1x4x1xf32, #tpu.memory_space<vmem>>, vector<1x1x4x1xf32>
    tpu.vector_store %arg6[%c0_23, %c0_24, %c0_25, %c0_26], %37 {strides = array<i32>} : memref<1x1x4x1xf32, #tpu.memory_space<vmem>>, vector<1x1x4x1xf32>,
    return
  }
  func.func @transform_0(%arg0: i32, %arg1: i32, %arg2: i32) -> (i32, i32, i32) {
    %c1_i32 = arith.constant 1 : i32
    %0 = arith.muli %arg1, %c1_i32 : i32
    %1 = arith.addi %0, %arg2 : i32
    %c0_i32 = arith.constant 0 : i32
    %c0_i32_0 = arith.constant 0 : i32
    return %arg0, %c0_i32, %1 : i32, i32, i32
  }
  func.func @transform_1(%arg0: i32, %arg1: i32, %arg2: i32) -> (i32, i32, i32) {
    %c1_i32 = arith.constant 1 : i32
    %0 = arith.muli %arg1, %c1_i32 : i32
    %1 = arith.addi %0, %arg2 : i32
    %c0_i32 = arith.constant 0 : i32
    %c0_i32_0 = arith.constant 0 : i32
    return %arg0, %c0_i32, %1 : i32, i32, i32
  }
  func.func @transform_2(%arg0: i32, %arg1: i32, %arg2: i32) -> (i32, i32, i32, i32) {
    %c0_i32 = arith.constant 0 : i32
    %c0_i32_0 = arith.constant 0 : i32
    %c0_i32_1 = arith.constant 0 : i32
    return %arg0, %arg1, %c0_i32, %c0_i32_0 : i32, i32, i32, i32
  }
  func.func @transform_3(%arg0: i32, %arg1: i32, %arg2: i32) -> (i32, i32, i32, i32) {
    %c0_i32 = arith.constant 0 : i32
    %c0_i32_0 = arith.constant 0 : i32
    %c0_i32_1 = arith.constant 0 : i32
    return %arg0, %arg1, %c0_i32, %c0_i32_0 : i32, i32, i32, i32
  }
}

</mosaic_0001>

<llo_original>
// kernel: tpu_custom_call.1
$region0: #{tpu_custom_call.1}
  #allocation0 [shape = 'u32[]', space=smem, size = 0x4, offset = 0x4, fixed_abs, tag = 'smem constant byte address 0x4 - core index']
  #allocation1 [shape = 'u32[144,128]{1,0:T(1,128)}', space=vmem, size = 0x12000, scoped, tag = 'internal scratch']
  %s0 = inlined_call_operand.hbm [shape: f32[2,4,256], index: 0, kind: input, shape index: {}]
  %s1 = inlined_call_operand.hbm [shape: s32[2,1,256], index: 1, kind: input, shape index: {}]
  %s2 = inlined_call_operand.vmem [shape: f32[2,1,4,1], index: 2, kind: output, shape index: {0}]
  %s3 = inlined_call_operand.vmem [shape: f32[2,1,4,1], index: 3, kind: output, shape index: {1}]
  %4 = xla_tuple %s2, %s3
  %s5 = sld [smem:[#allocation0]]
  $region61: #{tpu_custom_call.1} parent=0
    _
  %s7 = ssub.s32 1, %s5
  %s8 = scalar_select 0, %s7, %s5
  $region1: #{tpu_custom_call.1} parent=0
    #allocation2 [shape = 'u8[8192]{0}', space=vmem, size = 0x2000, scoped, tag = 'input window, operand 0']
    #allocation3 [shape = 's32[2]{0}', space=sflag, size = 0x8, scoped, tag = 'scoped memory for tpu_custom_call.1']
    #allocation4 [shape = 'u8[2048]{0}', space=vmem, size = 0x800, scoped, tag = 'input window, operand 1']
    #allocation5 [shape = 's32[2]{0}', space=sflag, size = 0x8, scoped, tag = 'scoped memory for tpu_custom_call.1']
    %9 = vsyncpa [#allocation3], 0
    %s10 = scalar_lea.sflag [#allocation3], 1
    %11 = vsyncpa %s10, 0
    %12 = vsyncpa [#allocation5], 0
    %s13 = scalar_lea.sflag [#allocation5], 1
    %14 = vsyncpa %s13, 0
    loop: start=0, step=1, limit=4
    $region2: #{tpu_custom_call.1} parent=1 // loop_pre_header
      _
    $region3: #{tpu_custom_call.1} parent=1 // loop_header
      %s16 = sphi 0, %s20
      %p17 = scmp.ge.s32.totalorder %s16, 4
      %s23 = sphi 0, %s42
      %s24 = sphi 0, %s38
      %s25 = sphi 0, %s34
      %s26 = sphi 0, %s23
      %s27 = sphi 0, %s24
      %s28 = sphi 0, %s25
      %s29 = sphi 0, %s26
      %s30 = sphi 0, %s27
      %s31 = sphi 0, %s28
      %s49 = sphi 0, %s51
      %s52 = sphi 0, %s49
      %s53 = sphi 0, %s52
      %s69 = sphi 0, %s53
      %s79 = sphi 0, %s81
      %s82 = sphi 0, %s79
      %s83 = sphi 0, %s82
      %s99 = sphi 0, %s83
      %s107 = sphi 0, %s109
      %s110 = sphi 0, %s107
      %s111 = sphi 0, %s110
      %s127 = sphi 0, %s111
      %s135 = sphi 0, %s137
      %s138 = sphi 0, %s135
      %s139 = sphi 0, %s138
      %s155 = sphi 0, %s139
    $region4: #{tpu_custom_call.1} parent=1 // loop_header_branch
      %19 = sbr.rel (%p17) target = $region8
    $region5: #{tpu_custom_call.1} parent=1 // loop_body
      %s21 = ssub.s32 %s16, 1
      %s22 = ssub.s32 %s16, 2
      %s32 = sadd.s32 1, %s25
      %p33 = scmp.ge.s32.totalorder %s32, 1
      %s34 = scalar_select %p33, 0, %s32
      %s35 = sadd.s32 1, %s24
      %s36 = scalar_select %p33, %s35, %s24
      %p37 = scmp.ge.s32.totalorder %s36, 1
      %s38 = scalar_select %p37, 0, %s36
      %s39 = sadd.s32 1, %s23
      %s40 = scalar_select %p37, %s39, %s23
      %p41 = scmp.ge.s32.totalorder %s40, 2
      %s42 = scalar_select %p41, 0, %s40
      %s43 = sadd.s32 %s24, %s25
      %s44 = sadd.s32 %s38, %s34
      %s45 = ssub.s32 %s23, %s42
      %s46 = ssub.s32 %s43, %s44
      %s47 = sor.u32 %s45, %s46
      %p48 = scmp.eq.s32.totalorder %s47, 0
      %s50 = sadd.s32 %s49, 1
      %s51 = scalar_select %p48, %s49, %s50
      %p54 = pneg %p48
      %p55 = scmp.eq.s32.totalorder %s16, 1
      %p56 = por %p54, %p55
      %p57 = scmp.ne.s32.totalorder %s49, %s52
      %p58 = scmp.eq.s32.totalorder %s16, 0
      %p59 = por %p57, %p58
      %p60 = scmp.ne.s32.totalorder %s49, %s52
      %p61 = scmp.eq.s32.totalorder %s21, 1
      %p62 = por %p60, %p61
      %p63 = scmp.ne.s32.totalorder %s52, %s53
      %p64 = scmp.eq.s32.totalorder %s21, 0
      %p65 = por %p63, %p64
      %p66 = scmp.ne.s32.totalorder %s52, %s53
      %p67 = scmp.eq.s32.totalorder %s22, 1
      %p68 = por %p66, %p67
      %p70 = scmp.ne.s32.totalorder %s53, %s69
      %p71 = scmp.eq.s32.totalorder %s22, 0
      %p72 = por %p70, %p71
      %s73 = sadd.s32 %s24, %s25
      %s74 = sadd.s32 %s38, %s34
      %s75 = ssub.s32 %s23, %s42
      %s76 = ssub.s32 %s73, %s74
      %s77 = sor.u32 %s75, %s76
      %p78 = scmp.eq.s32.totalorder %s77, 0
      %s80 = sadd.s32 %s79, 1
      %s81 = scalar_select %p78, %s79, %s80
      %p84 = pneg %p78
      %p85 = scmp.eq.s32.totalorder %s16, 1
      %p86 = por %p84, %p85
      %p87 = scmp.ne.s32.totalorder %s79, %s82
      %p88 = scmp.eq.s32.totalorder %s16, 0
      %p89 = por %p87, %p88
      %p90 = scmp.ne.s32.totalorder %s79, %s82
      %p91 = scmp.eq.s32.totalorder %s21, 1
      %p92 = por %p90, %p91
      %p93 = scmp.ne.s32.totalorder %s82, %s83
      %p94 = scmp.eq.s32.totalorder %s21, 0
      %p95 = por %p93, %p94
      %p96 = scmp.ne.s32.totalorder %s82, %s83
      %p97 = scmp.eq.s32.totalorder %s22, 1
      %p98 = por %p96, %p97
      %p100 = scmp.ne.s32.totalorder %s83, %s99
      %p101 = scmp.eq.s32.totalorder %s22, 0
      %p102 = por %p100, %p101
      %s103 = ssub.s32 %s23, %s42
      %s104 = ssub.s32 %s24, %s38
      %s105 = sor.u32 %s103, %s104
      %p106 = scmp.eq.s32.totalorder %s105, 0
      %s108 = sadd.s32 %s107, 1
      %s109 = scalar_select %p106, %s107, %s108
      %p112 = pneg %p106
      %p113 = scmp.eq.s32.totalorder %s16, 1
      %p114 = por %p112, %p113
      %p115 = scmp.ne.s32.totalorder %s107, %s110
      %p116 = scmp.eq.s32.totalorder %s16, 0
      %p117 = por %p115, %p116
      %p118 = scmp.ne.s32.totalorder %s107, %s110
      %p119 = scmp.eq.s32.totalorder %s21, 1
      %p120 = por %p118, %p119
      %p121 = scmp.ne.s32.totalorder %s110, %s111
      %p122 = scmp.eq.s32.totalorder %s21, 0
      %p123 = por %p121, %p122
      %p124 = scmp.ne.s32.totalorder %s110, %s111
      %p125 = scmp.eq.s32.totalorder %s22, 1
      %p126 = por %p124, %p125
      %p128 = scmp.ne.s32.totalorder %s111, %s127
      %p129 = scmp.eq.s32.totalorder %s22, 0
      %p130 = por %p128, %p129
      %s131 = ssub.s32 %s23, %s42
      %s132 = ssub.s32 %s24, %s38
      %s133 = sor.u32 %s131, %s132
      %p134 = scmp.eq.s32.totalorder %s133, 0
      %s136 = sadd.s32 %s135, 1
      %s137 = scalar_select %p134, %s135, %s136
      %p140 = pneg %p134
      %p141 = scmp.eq.s32.totalorder %s16, 1
      %p142 = por %p140, %p141
      %p143 = scmp.ne.s32.totalorder %s135, %s138
      %p144 = scmp.eq.s32.totalorder %s16, 0
      %p145 = por %p143, %p144
      %p146 = scmp.ne.s32.totalorder %s135, %s138
      %p147 = scmp.eq.s32.totalorder %s21, 1
      %p148 = por %p146, %p147
      %p149 = scmp.ne.s32.totalorder %s138, %s139
      %p150 = scmp.eq.s32.totalorder %s21, 0
      %p151 = por %p149, %p150
      %p152 = scmp.ne.s32.totalorder %s138, %s139
      %p153 = scmp.eq.s32.totalorder %s22, 1
      %p154 = por %p152, %p153
      %p156 = scmp.ne.s32.totalorder %s139, %s155
      %p157 = scmp.eq.s32.totalorder %s22, 0
      %p158 = por %p156, %p157
      %p159 = scmp.le.s32.totalorder 1, %s16
      %p160 = scmp.lt.s32.totalorder %s16, 3
      %p161 = pnand %p159, %p160
      %p162 = pneg %p161
      // Predicated region
      $region9: #{tpu_custom_call.1} parent=5 // pred_check
        _
      $region10: #{tpu_custom_call.1} parent=5 // pred_check_branch
        %164 = sbr.rel (%p161) target = $region12
      $region11: #{tpu_custom_call.1} parent=5 // pred_region
        %s165 = ssub.s32 %s16, 1
      $region12: #{tpu_custom_call.1} parent=5 // pred_fallthru
        _
      %p166 = scmp.lt.s32.totalorder %s16, 2
      // Predicated region
      $region13: #{tpu_custom_call.1} parent=5 // pred_check
        %p167 = pneg %p166
      $region14: #{tpu_custom_call.1} parent=5 // pred_check_branch
        %169 = sbr.rel (%p167) target = $region16
      $region15: #{tpu_custom_call.1} parent=5 // pred_region
        // Predicated region
        $region17: #{tpu_custom_call.1} parent=15 // pred_check
          %p170 = pneg %p59
        $region18: #{tpu_custom_call.1} parent=15 // pred_check_branch
          %172 = sbr.rel (%p170) target = $region20
        $region19: #{tpu_custom_call.1} parent=15 // pred_region
          %s173 = sand.u32 %s49, 1
          %s174 = scalar_lea.sflag [#allocation3], %s173
          %s175 = sand.u32 %s49, 1
          %s176 = smul.addr %s175, 8
          %s177 = scalar_lea.vmem [#allocation2], %s176
          %s178 = sadd.s32 %s24, %s25
          %s179 = smul.u32 2, %s178
          %s181 = ssub.s32 128, 128
          %182 = vsyncadd %s174, %s181
          %s183 = smul.addr %s23, 2
          %s184 = sadd.s32 %s179, %s183
          %s185 = smul.addr %s184, 64
          %s186 = scalar_lea.hbm %s0, %s185
          %s188 = sshll.u32 %s177, 4
          %s189 = int_to_ptr.vmem [resolvable:$true] %s188
          %191 = dma.hbm_to_vmem [thread:$0]  %s186, 128, %s189, %s174
        $region20: #{tpu_custom_call.1} parent=15 // pred_fallthru
          _
        // Predicated region
        $region21: #{tpu_custom_call.1} parent=15 // pred_check
          %p192 = pneg %p89
        $region22: #{tpu_custom_call.1} parent=15 // pred_check_branch
          %194 = sbr.rel (%p192) target = $region24
        $region23: #{tpu_custom_call.1} parent=15 // pred_region
          %s195 = sand.u32 %s79, 1
          %s196 = scalar_lea.sflag [#allocation5], %s195
          %s197 = sand.u32 %s79, 1
          %s198 = smul.addr %s197, 2
          %s199 = scalar_lea.vmem [#allocation4], %s198
          %s200 = sadd.s32 %s24, %s25
          %s201 = smul.u32 2, %s200
          %s203 = ssub.s32 32, 32
          %204 = vsyncadd %s196, %s203
          %s205 = smul.addr %s23, 2
          %s206 = sadd.s32 %s201, %s205
          %s207 = smul.addr %s206, 16
          %s208 = scalar_lea.hbm %s1, %s207
          %s210 = sshll.u32 %s199, 4
          %s211 = int_to_ptr.vmem [resolvable:$true] %s210
          %213 = dma.hbm_to_vmem [thread:$0]  %s208, 32, %s211, %s196
        $region24: #{tpu_custom_call.1} parent=15 // pred_fallthru
          _
      $region16: #{tpu_custom_call.1} parent=5 // pred_fallthru
        _
      %p214 = scmp.le.s32.totalorder 1, %s16
      %p215 = scmp.lt.s32.totalorder %s16, 3
      %p216 = pnand %p214, %p215
      %p217 = pneg %p216
      // Predicated region
      $region25: #{tpu_custom_call.1} parent=5 // pred_check
        _
      $region26: #{tpu_custom_call.1} parent=5 // pred_check_branch
        %219 = sbr.rel (%p216) target = $region28
      $region27: #{tpu_custom_call.1} parent=5 // pred_region
        %s220 = ssub.s32 %s16, 1
        %s221 = sand.u32 %s52, 1
        %s222 = scalar_lea.sflag [#allocation3], %s221
        %s223 = sand.u32 %s52, 1
        %s224 = smul.addr %s223, 8
        %s225 = scalar_lea.vmem [#allocation2], %s224
        // Predicated region
        $region29: #{tpu_custom_call.1} parent=27 // pred_check
          %p226 = pneg %p65
        $region30: #{tpu_custom_call.1} parent=27 // pred_check_branch
          %228 = sbr.rel (%p226) target = $region32
        $region31: #{tpu_custom_call.1} parent=27 // pred_region
          %229 = dma.done %s222, 128
        $region32: #{tpu_custom_call.1} parent=27 // pred_fallthru
          _
        %s230 = sand.u32 %s82, 1
        %s231 = scalar_lea.sflag [#allocation5], %s230
        %s232 = sand.u32 %s82, 1
        %s233 = smul.addr %s232, 2
        %s234 = scalar_lea.vmem [#allocation4], %s233
        // Predicated region
        $region33: #{tpu_custom_call.1} parent=27 // pred_check
          %p235 = pneg %p95
        $region34: #{tpu_custom_call.1} parent=27 // pred_check_branch
          %237 = sbr.rel (%p235) target = $region36
        $region35: #{tpu_custom_call.1} parent=27 // pred_region
          %238 = dma.done %s231, 32
        $region36: #{tpu_custom_call.1} parent=27 // pred_fallthru
          _
        %s239 = sand.u32 %s52, 1
        %s240 = scalar_lea.sflag [#allocation3], %s239
        %s241 = sand.u32 %s52, 1
        %s242 = smul.addr %s241, 8
        %s243 = scalar_lea.vmem [#allocation2], %s242
        %p244 = pneg %p65
        %p245 = pneg %p62
        %s246 = sand.u32 %s82, 1
        %s247 = scalar_lea.sflag [#allocation5], %s246
        %s248 = sand.u32 %s82, 1
        %s249 = smul.addr %s248, 2
        %s250 = scalar_lea.vmem [#allocation4], %s249
        %p251 = pneg %p95
        %p252 = pneg %p92
        %p253 = pneg %p123
        %p254 = pneg %p120
        %p255 = scmp.lt.s32.totalorder %s26, 1
        %s256 = scalar_select %p255, %s26, 1
        %p257 = scmp.lt.s32.totalorder %s27, 0
        %s258 = scalar_select %p257, %s27, 0
        %s259 = sadd.s32 %s258, %s256
        %s260 = smul.addr %s259, 4
        %s261 = scalar_lea.vmem %s2, %s260
        %p262 = pneg %p151
        %p263 = pneg %p148
        %p264 = scmp.lt.s32.totalorder %s26, 1
        %s265 = scalar_select %p264, %s26, 1
        %p266 = scmp.lt.s32.totalorder %s27, 0
        %s267 = scalar_select %p266, %s27, 0
        %s268 = sadd.s32 %s267, %s265
        %s269 = smul.addr %s268, 4
        %s270 = scalar_lea.vmem %s3, %s269
        %s271 = sadd.s32 %s27, %s28
        %s272 = smul.u32 2, %s271
        %s273 = sadd.s32 %s27, %s28
        %s274 = smul.u32 2, %s273
        %p275 = scmp.lt.s32.totalorder %s26, 1
        %s276 = scalar_select %p275, %s26, 1
        %p277 = scmp.lt.s32.totalorder %s27, 0
        %s278 = scalar_select %p277, %s27, 0
        %s279 = sadd.s32 %s278, %s276
        %s280 = smul.addr %s279, 4
        %s281 = scalar_lea.vmem %s2, %s280
        %p282 = scmp.lt.s32.totalorder %s26, 1
        %s283 = scalar_select %p282, %s26, 1
        %p284 = scmp.lt.s32.totalorder %s27, 0
        %s285 = scalar_select %p284, %s27, 0
        %s286 = sadd.s32 %s285, %s283
        %s287 = smul.addr %s286, 4
        %s288 = scalar_lea.vmem %s3, %s287
        %p289 = scmp.eq.s32.totalorder %s28, 0
        // Predicated region
        $region37: #{tpu_custom_call.1} parent=27 // pred_check
          %p290 = pneg %p289
        $region38: #{tpu_custom_call.1} parent=27 // pred_check_branch
          %292 = sbr.rel (%p290) target = $region40
        $region39: #{tpu_custom_call.1} parent=27 // pred_region
          %vm293 = vcmask 3072
          %294 = vst.msk [vmem:[%s281] sm:$0xf] %vm293, 0.0
          %295 = vst.msk [vmem:[%s288] sm:$0xf] %vm293, 0.0
        $region40: #{tpu_custom_call.1} parent=27 // pred_fallthru
          _
        %v296 = vld [vmem:[%s225] sm:$0xff]
        %v297 = vld [vmem:[%s234] sm:$0x3]
        %v299 = vcombine.high %v296, %v296
        %vm301 = vcmask 1043456
        %v302 = vsel %vm301, %v296, -inf
        %v303 = vrot.slane %v302, 4
        %v304 = vmax.f32 %v302, %v303
        %v305 = vrot.slane %v304, 2
        %v306 = vmax.f32 %v304, %v305
        %v307 = vrot.slane %v306, 1
        %v308 = vmax.f32 %v306, %v307
        %v309 = vsel %vm301, %v299, -inf
        %v310 = vrot.slane %v309, 4
        %v311 = vmax.f32 %v309, %v310
        %v312 = vrot.slane %v311, 2
        %v313 = vmax.f32 %v311, %v312
        %v314 = vrot.slane %v313, 1
        %v315 = vmax.f32 %v313, %v314
        %v318 = vcombine.low %v308, %v315
        %v320 = vsub.f32 %v296, %v318
        %v321 = vmul.f32 %v320, 1.442695
        %v322 = vpow.pop %v321
        %v324 = vcombine.high %v322, %v322
        %v326 = vsel %vm301, %v322, 0.0
        %v327 = vrot.slane %v326, 4
        %v328 = vadd.f32 %v326, %v327
        %v329 = vrot.slane %v328, 2
        %v330 = vadd.f32 %v328, %v329
        %v331 = vrot.slane %v330, 1
        %v332 = vadd.f32 %v330, %v331
        %v333 = vsel %vm301, %v324, 0.0
        %v334 = vrot.slane %v333, 4
        %v335 = vadd.f32 %v333, %v334
        %v336 = vrot.slane %v335, 2
        %v337 = vadd.f32 %v335, %v336
        %v338 = vrot.slane %v337, 1
        %v339 = vadd.f32 %v337, %v338
        %v340 = vrcp.pop %v332
        %v341 = vrcp.pop %v339
        %v344 = vcombine.low %v340, %v341
        %v346 = vmul.f32 %v322, %v344
        %v347 = vlaneseq
        %v348 = vshrl.u32 %v347, 7
        %v349 = vlaneseq
        %v350 = vshrl.u32 %v349, 7
        %v351 = vsub.s32 0, %v350
        %v352 = vrot.slane %v297, %v351
        %v353 = vlaneseq
        %v354 = vshrl.u32 %v353, 7
        %v355 = vsub.s32 1, %v354
        %v356 = vrot.slane %v297, %v355
        %vm357 = vcmp.eq.s32.totalorder %v348, %v352
        %vm358 = vcmp.eq.s32.totalorder %v348, %v356
        %v360 = vcombine.high %v346, %v346
        %v362 = vsel %vm357, %v346, 0.0
        %v363 = vsel %vm358, %v360, 0.0
        %v364 = vsel %vm301, %v362, 0.0
        %v365 = vsel %vm301, %v363, 0.0
        %v366 = vadd.f32 %v364, %v365
        %367 = vadd.xlane.f32.xlu0 %v366
        %v368 = vpop.xlane.xlu0 %367
        %v369 = vsel %vm301, %v346, 0.0
        %v370 = vsel %vm301, %v360, 0.0
        %v371 = vadd.f32 %v369, %v370
        %372 = vadd.xlane.f32.xlu0 %v371
        %v373 = vpop.xlane.xlu0 %372
        %v374 = vsel %vm357, 1, 0
        %v375 = vsel %vm358, 1, 0
        %v376 = vcvt.s32.f32 %v374
        %v377 = vcvt.s32.f32 %v375
        %v378 = vsel %vm301, %v376, 0.0
        %v379 = vsel %vm301, %v377, 0.0
        %v380 = vadd.f32 %v378, %v379
        %381 = vadd.xlane.f32.xlu0 %v380
        %v382 = vpop.xlane.xlu0 %381
        %v383 = vadd.f32 %v373, %v382
        %v384 = vsub.f32 %v383, %v368
        %v385 = vld [vmem:[%s281] sm:$0xf]
        %v386 = vadd.f32 %v385, %v368
        %vm387 = vcmask 3072
        %388 = vst.msk [vmem:[%s281] sm:$0xf] %vm387, %v386
        %v389 = vld [vmem:[%s288] sm:$0xf]
        %v390 = vadd.f32 %v389, %v384
        %391 = vst.msk [vmem:[%s288] sm:$0xf] %vm387, %v390
        %p392 = scmp.lt.s32.totalorder %s26, 1
        %s393 = scalar_select %p392, %s26, 1
        %p394 = scmp.lt.s32.totalorder %s27, 0
        %s395 = scalar_select %p394, %s27, 0
        %s396 = sadd.s32 %s395, %s393
        %s397 = smul.addr %s396, 4
        %s398 = scalar_lea.vmem %s2, %s397
        %p399 = scmp.lt.s32.totalorder %s26, 1
        %s400 = scalar_select %p399, %s26, 1
        %p401 = scmp.lt.s32.totalorder %s27, 0
        %s402 = scalar_select %p401, %s27, 0
        %s403 = sadd.s32 %s402, %s400
        %s404 = smul.addr %s403, 4
        %s405 = scalar_lea.vmem %s3, %s404
        // Predicated region
        $region41: #{tpu_custom_call.1} parent=27 // pred_check
          %p406 = pneg %p120
        $region42: #{tpu_custom_call.1} parent=27 // pred_check_branch
          %408 = sbr.rel (%p406) target = $region44
        $region43: #{tpu_custom_call.1} parent=27 // pred_region
          _
        $region44: #{tpu_custom_call.1} parent=27 // pred_fallthru
          _
        // Predicated region
        $region45: #{tpu_custom_call.1} parent=27 // pred_check
          %p409 = pneg %p148
        $region46: #{tpu_custom_call.1} parent=27 // pred_check_branch
          %411 = sbr.rel (%p409) target = $region48
        $region47: #{tpu_custom_call.1} parent=27 // pred_region
          _
        $region48: #{tpu_custom_call.1} parent=27 // pred_fallthru
          _
      $region28: #{tpu_custom_call.1} parent=5 // pred_fallthru
        _
      %p412 = scmp.le.s32.totalorder 2, %s16
      // Predicated region
      $region49: #{tpu_custom_call.1} parent=5 // pred_check
        %p413 = pneg %p412
      $region50: #{tpu_custom_call.1} parent=5 // pred_check_branch
        %415 = sbr.rel (%p413) target = $region52
      $region51: #{tpu_custom_call.1} parent=5 // pred_region
        %s416 = ssub.s32 %s16, 2
        // Predicated region
        $region53: #{tpu_custom_call.1} parent=51 // pred_check
          %p417 = pneg %p126
        $region54: #{tpu_custom_call.1} parent=51 // pred_check_branch
          %419 = sbr.rel (%p417) target = $region56
        $region55: #{tpu_custom_call.1} parent=51 // pred_region
          %p420 = scmp.lt.s32.totalorder %s29, 1
          %s421 = scalar_select %p420, %s29, 1
          %p422 = scmp.lt.s32.totalorder %s30, 0
          %s423 = scalar_select %p422, %s30, 0
          %s424 = sadd.s32 %s423, %s421
          %s425 = smul.addr %s424, 4
          %s426 = scalar_lea.vmem %s2, %s425
        $region56: #{tpu_custom_call.1} parent=51 // pred_fallthru
          _
        // Predicated region
        $region57: #{tpu_custom_call.1} parent=51 // pred_check
          %p427 = pneg %p154
        $region58: #{tpu_custom_call.1} parent=51 // pred_check_branch
          %429 = sbr.rel (%p427) target = $region60
        $region59: #{tpu_custom_call.1} parent=51 // pred_region
          %p430 = scmp.lt.s32.totalorder %s29, 1
          %s431 = scalar_select %p430, %s29, 1
          %p432 = scmp.lt.s32.totalorder %s30, 0
          %s433 = scalar_select %p432, %s30, 0
          %s434 = sadd.s32 %s433, %s431
          %s435 = smul.addr %s434, 4
          %s436 = scalar_lea.vmem %s3, %s435
        $region60: #{tpu_custom_call.1} parent=51 // pred_fallthru
          _
      $region52: #{tpu_custom_call.1} parent=5 // pred_fallthru
        _
    $region6: #{tpu_custom_call.1} parent=1 // loop_footer
      %s20 = sadd.s32 1, %s16
    $region7: #{tpu_custom_call.1} parent=1 // loop_footer_branch
      %15 = sbr.rel target = $region3
    $region8: #{tpu_custom_call.1} parent=1 // loop_exit
      _
    %437 = vsyncpa [#allocation3], 1
    %s438 = scalar_lea.sflag [#allocation3], 1
    %439 = vsyncpa %s438, 1
    %440 = vsyncpa [#allocation5], 1
    %s441 = scalar_lea.sflag [#allocation5], 1
    %442 = vsyncpa %s441, 1

</llo_original>
